<compile_context>
chip_gen: v7x
topology: tpu7x:2x2x1
jax: 0.10.0
libtpu: 0.0.40
codegen_flags: <defaults>
</compile_context>

<pallas_src>
import jax
import jax.numpy as jnp
from jax.experimental import pallas as pl
from jax.experimental.pallas import tpu as pltpu


def _round_up(n, m):
    return (n + m - 1) // m * m


def _encoder_kernel(x_ref, w1_ref, b1_ref, w2_ref, b2_ref, o_ref):
    # hidden = relu(x @ W1 + b1): bf16 MXU operands, f32 accumulate,
    # bias-add + relu in f32 (v5e VPU has no bf16).
    h = jnp.dot(x_ref[...], w1_ref[...], preferred_element_type=jnp.float32)
    h = jnp.maximum(h + b1_ref[...], 0.0)
    # out = hidden @ W2 + b2: downcast hidden to bf16 only for the MXU.
    o = jnp.dot(h.astype(jnp.bfloat16), w2_ref[...],
                preferred_element_type=jnp.float32)
    o_ref[...] = (o + b2_ref[...]).astype(o_ref.dtype)


def encoder_forward(x, w1, b1, w2, b2, *, block_b=256):
    """x: (B, D_in) f32; w1: (D_in, D_hid); b1: (D_hid,)/(1, D_hid);
    w2: (D_hid, D_lat); b2: (D_lat,)/(1, D_lat).  Returns (B, D_lat) f32."""
    B, D_in = x.shape
    D_hid = w1.shape[1]
    D_lat = w2.shape[1]

    b1 = b1.reshape(1, D_hid).astype(jnp.float32)
    b2 = b2.reshape(1, D_lat).astype(jnp.float32)

    # Batch tiling: pad B to a multiple of 8 (sublanes), tile at <= block_b.
    TB = min(block_b, max(_round_up(B, 8), 8))
    B_pad = _round_up(B, TB)
    # Lane-dense output: pad the latent dim to a multiple of 128.
    D_lat_pad = _round_up(D_lat, 128)

    x_p = x if B_pad == B else jnp.pad(x, ((0, B_pad - B), (0, 0)))
    if D_lat_pad != D_lat:
        w2_p = jnp.pad(w2, ((0, 0), (0, D_lat_pad - D_lat)))
        b2_p = jnp.pad(b2, ((0, 0), (0, D_lat_pad - D_lat)))
    else:
        w2_p, b2_p = w2, b2

    # bf16 MXU operands (halves weight/input DMA bytes; f32 accumulate in-kernel).
    x_bf = x_p.astype(jnp.bfloat16)
    w1_bf = w1.astype(jnp.bfloat16)
    w2_bf = w2_p.astype(jnp.bfloat16)

    grid = (B_pad // TB,)

    flops = 2 * B_pad * (D_in * D_hid + D_hid * D_lat_pad)
    bytes_accessed = (x_bf.size * 2 + w1_bf.size * 2 + w2_bf.size * 2
                      + b1.size * 4 + b2_p.size * 4 + B_pad * D_lat_pad * 4)

    out_pad = pl.pallas_call(
        _encoder_kernel,
        out_shape=jax.ShapeDtypeStruct((B_pad, D_lat_pad), jnp.float32),
        grid_spec=pltpu.PrefetchScalarGridSpec(
            num_scalar_prefetch=0,
            grid=grid,
            in_specs=[
                pl.BlockSpec((TB, D_in), lambda i: (i, 0)),        # x tile (pipelined)
                pl.BlockSpec((D_in, D_hid), lambda i: (0, 0)),     # W1 (VMEM-resident)
                pl.BlockSpec((1, D_hid), lambda i: (0, 0)),        # b1
                pl.BlockSpec((D_hid, D_lat_pad), lambda i: (0, 0)),# W2 (VMEM-resident)
                pl.BlockSpec((1, D_lat_pad), lambda i: (0, 0)),    # b2
            ],
            out_specs=pl.BlockSpec((TB, D_lat_pad), lambda i: (i, 0)),
        ),
        compiler_params=pltpu.CompilerParams(
            dimension_semantics=("parallel",),
        ),
        cost_estimate=pl.CostEstimate(
            flops=flops, transcendentals=0, bytes_accessed=bytes_accessed),
    )(x_bf, w1_bf, b1, w2_bf, b2_p)

    return out_pad[:B, :D_lat]


def init_encoder_params(key, input_size, latent_dims):
    """Deterministic init mirroring nn.Linear's default U(-1/sqrt(fan_in), ...).
    Weights are stored pre-transposed as (in_features, out_features)."""
    hidden = int(2 / 3 * input_size)  # matches int(2/3 * input_size) in the module
    k1, k2, k3, k4 = jax.random.split(key, 4)

    bound1 = 1.0 / jnp.sqrt(input_size)
    w1 = jax.random.uniform(k1, (input_size, hidden), jnp.float32, -bound1, bound1)
    b1 = jax.random.uniform(k2, (1, hidden), jnp.float32, -bound1, bound1)

    bound2 = 1.0 / jnp.sqrt(hidden)
    w2 = jax.random.uniform(k3, (hidden, latent_dims), jnp.float32, -bound2, bound2)
    b2 = jax.random.uniform(k4, (1, latent_dims), jnp.float32, -bound2, bound2)
    return w1, b1, w2, b2


def _reference_f32(x, w1, b1, w2, b2):
    return jnp.maximum(x @ w1 + b1, 0.0) @ w2 + b2


if __name__ == "__main__":
    # Module-consistent small shapes: N_MELS=16, pow_size=12 -> input_size=192,
    # hidden = int(2/3 * 192) = 128, LATENT_DIMS = 32, batch = 2.
    N_MELS = 16
    POW_SIZE = 12
    INPUT_SIZE = POW_SIZE * N_MELS      # 192
    LATENT_DIMS = 32
    BATCH = 2

    key = jax.random.PRNGKey(0)
    k_x, k_x2, k_p = jax.random.split(key, 3)

    w1, b1, w2, b2 = init_encoder_params(k_p, INPUT_SIZE, LATENT_DIMS)

    # --- small batch (B=2, padded to 8 inside the wrapper) -------------------
    x = jax.random.normal(k_x, (BATCH, INPUT_SIZE), dtype=jnp.float32)
    out = jax.block_until_ready(encoder_forward(x, w1, b1, w2, b2))
    assert out.shape == (BATCH, LATENT_DIMS)

    # Reference with identical bf16-operand / f32-accumulate math.
    h_ref = jnp.maximum(
        jnp.dot(x.astype(jnp.bfloat16), w1.astype(jnp.bfloat16),
                preferred_element_type=jnp.float32) + b1, 0.0)
    ref_bf = jnp.dot(h_ref.astype(jnp.bfloat16), w2.astype(jnp.bfloat16),
                     preferred_element_type=jnp.float32) + b2
    assert jnp.allclose(out, ref_bf, atol=1e-3, rtol=1e-3)

    # Loose sanity check against the exact f32 PyTorch semantics (bf16 MXU
    # operands introduce ~1e-3-level deviations at these scales).
    ref_f32 = _reference_f32(x, w1, b1, w2, b2)
    assert jnp.allclose(out, ref_f32, atol=3e-2, rtol=3e-2)

    # --- larger batch to exercise the grid / padding path --------------------
    x2 = jax.random.normal(k_x2, (300, INPUT_SIZE), dtype=jnp.float32)
    out2 = jax.block_until_ready(encoder_forward(x2, w1, b1, w2, b2))
    assert out2.shape == (300, LATENT_DIMS)
    ref2 = _reference_f32(x2, w1, b1, w2, b2)
    assert jnp.allclose(out2, ref2, atol=3e-2, rtol=3e-2)

    print("KERNEL_OK")
</pallas_src>

<mosaic_0001>
module attributes {stable_mosaic.version = 11 : i64} {
  func.func @_encoder_kernel(%arg0: i32, %arg1: memref<8x192xbf16, #tpu.memory_space<vmem>>, %arg2: memref<192x128xbf16, #tpu.memory_space<vmem>>, %arg3: memref<1x128xf32, #tpu.memory_space<vmem>>, %arg4: memref<128x128xbf16, #tpu.memory_space<vmem>>, %arg5: memref<1x128xf32, #tpu.memory_space<vmem>>, %arg6: memref<8x128xf32, #tpu.memory_space<vmem>>) attributes {dimension_semantics = [#tpu.dimension_semantics<parallel>], iteration_bounds = array<i64: 1>, scalar_prefetch = 0 : i64, scratch_operands = 0 : i64, tpu.core_type = #tpu.core_type<tc>, window_params = [{transform_indices = @transform_0, window_bounds = array<i64: 8, 192>}, {pipeline_mode = #tpu.pipeline_mode<synchronous>, transform_indices = @transform_1, window_bounds = array<i64: 192, 128>}, {pipeline_mode = #tpu.pipeline_mode<synchronous>, transform_indices = @transform_2, window_bounds = array<i64: 1, 128>}, {pipeline_mode = #tpu.pipeline_mode<synchronous>, transform_indices = @transform_3, window_bounds = array<i64: 128, 128>}, {pipeline_mode = #tpu.pipeline_mode<synchronous>, transform_indices = @transform_4, window_bounds = array<i64: 1, 128>}, {transform_indices = @transform_5, window_bounds = array<i64: 8, 128>}]} {
    %c0 = arith.constant 0 : index
    %c0_0 = arith.constant 0 : index
    %0 = vector.load %arg1[%c0, %c0_0] : memref<8x192xbf16, #tpu.memory_space<vmem>>, vector<8x192xbf16>
    %c0_1 = arith.constant 0 : index
    %c0_2 = arith.constant 0 : index
    %1 = vector.load %arg2[%c0_1, %c0_2] : memref<192x128xbf16, #tpu.memory_space<vmem>>, vector<192x128xbf16>
    %cst = arith.constant dense<0.000000e+00> : vector<8x128xf32>
    %2 = tpu.matmul %0, %1, %cst {dimension_numbers = #tpu.dot_dimension_numbers<[1], [0], [0], [1], [0, 0, 1, 1], [], []>} : vector<8x192xbf16>, vector<192x128xbf16>, vector<8x128xf32> -> vector<8x128xf32>
    %c0_3 = arith.constant 0 : index
    %c0_4 = arith.constant 0 : index
    %3 = vector.load %arg3[%c0_3, %c0_4] : memref<1x128xf32, #tpu.memory_space<vmem>>, vector<1x128xf32>
    %4 = vector.broadcast %3 : vector<1x128xf32> to vector<8x128xf32>
    %5 = arith.addf %2, %4 : vector<8x128xf32>
    %cst_5 = arith.constant 0.000000e+00 : f32
    %6 = vector.broadcast %cst_5 : f32 to vector<8x128xf32>
    %7 = arith.maximumf %5, %6 : vector<8x128xf32>
    %8 = arith.truncf %7 : vector<8x128xf32> to vector<8x128xbf16>
    %c0_6 = arith.constant 0 : index
    %c0_7 = arith.constant 0 : index
    %9 = vector.load %arg4[%c0_6, %c0_7] : memref<128x128xbf16, #tpu.memory_space<vmem>>, vector<128x128xbf16>
    %cst_8 = arith.constant dense<0.000000e+00> : vector<8x128xf32>
    %10 = tpu.matmul %8, %9, %cst_8 {dimension_numbers = #tpu.dot_dimension_numbers<[1], [0], [0], [1], [0, 0, 1, 1], [], []>} : vector<8x128xbf16>, vector<128x128xbf16>, vector<8x128xf32> -> vector<8x128xf32>
    %c0_9 = arith.constant 0 : index
    %c0_10 = arith.constant 0 : index
    %11 = vector.load %arg5[%c0_9, %c0_10] : memref<1x128xf32, #tpu.memory_space<vmem>>, vector<1x128xf32>
    %12 = vector.broadcast %11 : vector<1x128xf32> to vector<8x128xf32>
    %13 = arith.addf %10, %12 : vector<8x128xf32>
    %c0_11 = arith.constant 0 : index
    %c0_12 = arith.constant 0 : index
    %14 = vector.load %arg6[%c0_11, %c0_12] : memref<8x128xf32, #tpu.memory_space<vmem>>, vector<8x128xf32>
    tpu.vector_store %arg6[%c0_11, %c0_12], %13 {strides = array<i32>} : memref<8x128xf32, #tpu.memory_space<vmem>>, vector<8x128xf32>,
    return
  }
  func.func @transform_0(%arg0: i32) -> (i32, i32) {
    %c0_i32 = arith.constant 0 : i32
    %c0_i32_0 = arith.constant 0 : i32
    return %arg0, %c0_i32 : i32, i32
  }
  func.func @transform_1(%arg0: i32) -> (i32, i32) {
    %c0_i32 = arith.constant 0 : i32
    %c0_i32_0 = arith.constant 0 : i32
    %c0_i32_1 = arith.constant 0 : i32
    return %c0_i32, %c0_i32_0 : i32, i32
  }
  func.func @transform_2(%arg0: i32) -> (i32, i32) {
    %c0_i32 = arith.constant 0 : i32
    %c0_i32_0 = arith.constant 0 : i32
    %c0_i32_1 = arith.constant 0 : i32
    return %c0_i32, %c0_i32_0 : i32, i32
  }
  func.func @transform_3(%arg0: i32) -> (i32, i32) {
    %c0_i32 = arith.constant 0 : i32
    %c0_i32_0 = arith.constant 0 : i32
    %c0_i32_1 = arith.constant 0 : i32
    return %c0_i32, %c0_i32_0 : i32, i32
  }
  func.func @transform_4(%arg0: i32) -> (i32, i32) {
    %c0_i32 = arith.constant 0 : i32
    %c0_i32_0 = arith.constant 0 : i32
    %c0_i32_1 = arith.constant 0 : i32
    return %c0_i32, %c0_i32_0 : i32, i32
  }
  func.func @transform_5(%arg0: i32) -> (i32, i32) {
    %c0_i32 = arith.constant 0 : i32
    %c0_i32_0 = arith.constant 0 : i32
    return %arg0, %c0_i32 : i32, i32
  }
}

</mosaic_0001>

<llo_original>
// kernel: tpu_custom_call.1
$region0: #{tpu_custom_call.1}
  #allocation0 [shape = 'u32[]', space=smem, size = 0x4, offset = 0x4, fixed_abs, tag = 'smem constant byte address 0x4 - core index']
  #allocation1 [shape = 'u32[144,128]{1,0:T(1,128)}', space=vmem, size = 0x12000, scoped, tag = 'internal scratch']
  %s0 = inlined_call_operand.hbm [shape: bf16[8,192], index: 0, kind: input, shape index: {}]
  %s1 = inlined_call_operand.hbm [shape: bf16[192,128], index: 1, kind: input, shape index: {}]
  %s2 = inlined_call_operand.vmem [shape: f32[1,128], index: 2, kind: input, shape index: {}]
  %s3 = inlined_call_operand.hbm [shape: bf16[128,128], index: 3, kind: input, shape index: {}]
  %s4 = inlined_call_operand.vmem [shape: f32[1,128], index: 4, kind: input, shape index: {}]
  %s5 = inlined_call_operand.hbm [shape: f32[8,128], index: 5, kind: output, shape index: {}]
  %s6 = sld [smem:[#allocation0]]
  $region42: #{tpu_custom_call.1} parent=0
    _
  %s8 = ssub.s32 1, %s6
  %s9 = scalar_select 0, %s8, %s6
  $region1: #{tpu_custom_call.1} parent=0
    #allocation2 [shape = 'u8[4096]{0}', space=vmem, size = 0x1000, scoped, tag = 'input window, operand 0, single buffered']
    #allocation3 [shape = 's32[1]{0}', space=sflag, size = 0x4, scoped, tag = 'scoped memory for tpu_custom_call.1']
    #allocation4 [shape = 's32[1]{0}', space=sflag, size = 0x4, scoped, tag = 'scoped memory for tpu_custom_call.1']
    #allocation5 [shape = 'u8[49152]{0}', space=vmem, size = 0xc000, scoped, tag = 'input window, operand 1, single buffered']
    #allocation6 [shape = 's32[1]{0}', space=sflag, size = 0x4, scoped, tag = 'scoped memory for tpu_custom_call.1']
    #allocation7 [shape = 'u8[32768]{0}', space=vmem, size = 0x8000, scoped, tag = 'input window, operand 3, single buffered']
    #allocation8 [shape = 'u8[4096]{0}', space=vmem, size = 0x1000, scoped, tag = 'output window, operand 0, single buffered']
    %10 = vsyncpa [#allocation3], 0
    %11 = vsyncpa [#allocation6], 0
    %12 = vsyncpa [#allocation4], 0
    // Predicated region
    $region2: #{tpu_custom_call.1} parent=1 // pred_check
      _
    $region3: #{tpu_custom_call.1} parent=1 // pred_check_branch
      %14 = sbr.rel (0) target = $region5
    $region4: #{tpu_custom_call.1} parent=1 // pred_region
      %s16 = ssub.s32 128, 128
      %17 = vsyncadd [#allocation3], %s16
      %s19 = sshll.u32 [#allocation2], 4
      %s20 = int_to_ptr.vmem [resolvable:$true] %s19
      %22 = dma.hbm_to_vmem [thread:$0]  %s0, 128, %s20, [#allocation3]
    $region5: #{tpu_custom_call.1} parent=1 // pred_fallthru
      _
    // Predicated region
    $region6: #{tpu_custom_call.1} parent=1 // pred_check
      _
    $region7: #{tpu_custom_call.1} parent=1 // pred_check_branch
      %24 = sbr.rel (0) target = $region9
    $region8: #{tpu_custom_call.1} parent=1 // pred_region
      %s26 = ssub.s32 1536, 1536
      %27 = vsyncadd [#allocation6], %s26
      %s28 = sshll.u32 [#allocation5], 4
      %s29 = int_to_ptr.vmem [resolvable:$true] %s28
      %34 = dma.hbm_to_vmem [thread:$0]  %s1, 1536, %s29, [#allocation6], 64, 64, 4
    $region9: #{tpu_custom_call.1} parent=1 // pred_fallthru
      _
    // Predicated region
    $region10: #{tpu_custom_call.1} parent=1 // pred_check
      _
    $region11: #{tpu_custom_call.1} parent=1 // pred_check_branch
      %36 = sbr.rel (0) target = $region13
    $region12: #{tpu_custom_call.1} parent=1 // pred_region
      _
    $region13: #{tpu_custom_call.1} parent=1 // pred_fallthru
      _
    // Predicated region
    $region14: #{tpu_custom_call.1} parent=1 // pred_check
      _
    $region15: #{tpu_custom_call.1} parent=1 // pred_check_branch
      %38 = sbr.rel (0) target = $region17
    $region16: #{tpu_custom_call.1} parent=1 // pred_region
      %s40 = ssub.s32 1024, 1024
      %41 = vsyncadd [#allocation6], %s40
      %s42 = sshll.u32 [#allocation7], 4
      %s43 = int_to_ptr.vmem [resolvable:$true] %s42
      %48 = dma.hbm_to_vmem [thread:$0]  %s3, 1024, %s43, [#allocation6], 64, 64, 4
    $region17: #{tpu_custom_call.1} parent=1 // pred_fallthru
      _
    // Predicated region
    $region18: #{tpu_custom_call.1} parent=1 // pred_check
      _
    $region19: #{tpu_custom_call.1} parent=1 // pred_check_branch
      %50 = sbr.rel (0) target = $region21
    $region20: #{tpu_custom_call.1} parent=1 // pred_region
      _
    $region21: #{tpu_custom_call.1} parent=1 // pred_fallthru
      _
    // Predicated region
    $region22: #{tpu_custom_call.1} parent=1 // pred_check
      _
    $region23: #{tpu_custom_call.1} parent=1 // pred_check_branch
      %52 = sbr.rel (0) target = $region25
    $region24: #{tpu_custom_call.1} parent=1 // pred_region
      %53 = dma.done [#allocation3], 128
    $region25: #{tpu_custom_call.1} parent=1 // pred_fallthru
      _
    // Predicated region
    $region26: #{tpu_custom_call.1} parent=1 // pred_check
      _
    $region27: #{tpu_custom_call.1} parent=1 // pred_check_branch
      %55 = sbr.rel (0) target = $region29
    $region28: #{tpu_custom_call.1} parent=1 // pred_region
      %56 = dma.done [#allocation6], 1536
    $region29: #{tpu_custom_call.1} parent=1 // pred_fallthru
      _
    // Predicated region
    $region30: #{tpu_custom_call.1} parent=1 // pred_check
      _
    $region31: #{tpu_custom_call.1} parent=1 // pred_check_branch
      %58 = sbr.rel (0) target = $region33
    $region32: #{tpu_custom_call.1} parent=1 // pred_region
      %59 = dma.done [#allocation6], 1024
    $region33: #{tpu_custom_call.1} parent=1 // pred_fallthru
      _
    %v61 = vld [vmem:[#allocation2] sm:$0xff]
    %v62 = vld [vmem:[#allocation5] sm:$0xf]
    %v63 = vld [vmem:[#allocation5 + $0x4] sm:$0xf]
    %v64 = vld [vmem:[#allocation5 + $0x8] sm:$0xf]
    %v65 = vld [vmem:[#allocation5 + $0xc] sm:$0xf]
    %v66 = vld [vmem:[#allocation5 + $0x10] sm:$0xf]
    %v67 = vld [vmem:[#allocation5 + $0x14] sm:$0xf]
    %v68 = vld [vmem:[#allocation5 + $0x18] sm:$0xf]
    %v69 = vld [vmem:[#allocation5 + $0x1c] sm:$0xf]
    %v70 = vld [vmem:[#allocation5 + $0x20] sm:$0xf]
    %v71 = vld [vmem:[#allocation5 + $0x24] sm:$0xf]
    %v72 = vld [vmem:[#allocation5 + $0x28] sm:$0xf]
    %v73 = vld [vmem:[#allocation5 + $0x2c] sm:$0xf]
    %v74 = vld [vmem:[#allocation5 + $0x30] sm:$0xf]
    %v75 = vld [vmem:[#allocation5 + $0x34] sm:$0xf]
    %v76 = vld [vmem:[#allocation5 + $0x38] sm:$0xf]
    %v77 = vld [vmem:[#allocation5 + $0x3c] sm:$0xf]
    %v78 = vld [vmem:[#allocation5 + $0x40] sm:$0xf]
    %v79 = vld [vmem:[#allocation5 + $0x44] sm:$0xf]
    %v80 = vld [vmem:[#allocation5 + $0x48] sm:$0xf]
    %v81 = vld [vmem:[#allocation5 + $0x4c] sm:$0xf]
    %v82 = vld [vmem:[#allocation5 + $0x50] sm:$0xf]
    %v83 = vld [vmem:[#allocation5 + $0x54] sm:$0xf]
    %v84 = vld [vmem:[#allocation5 + $0x58] sm:$0xf]
    %v85 = vld [vmem:[#allocation5 + $0x5c] sm:$0xf]
    %v86 = vld [vmem:[%s2] sm:$0x1]
    %v88 = vlaneseq
    %v89 = vshrl.u32 %v88, 7
    %v90 = vsub.s32 0, %v89
    %v91 = vrot.slane %v86, %v90
    %v94 = vunpack.c.l.b16 %v61
    %v95 = vunpack.c.h.b16 %v61
    %v96 = vpack.c.b16 %v94, %v94
    %v97 = vpack.c.b16 %v95, %v95
    %v123 = vunpack.c.l.b16 %v62
    %v124 = vunpack.c.l.b16 %v63
    %v125 = vunpack.c.l.b16 %v64
    %v126 = vunpack.c.l.b16 %v65
    %v127 = vunpack.c.l.b16 %v66
    %v128 = vunpack.c.l.b16 %v67
    %v129 = vunpack.c.l.b16 %v68
    %v130 = vunpack.c.l.b16 %v69
    %v131 = vunpack.c.l.b16 %v70
    %v132 = vunpack.c.l.b16 %v71
    %v133 = vunpack.c.l.b16 %v72
    %v134 = vunpack.c.l.b16 %v73
    %v135 = vunpack.c.l.b16 %v74
    %v136 = vunpack.c.l.b16 %v75
    %v137 = vunpack.c.l.b16 %v76
    %v138 = vunpack.c.l.b16 %v77
    %v139 = vunpack.c.l.b16 %v78
    %v140 = vunpack.c.l.b16 %v79
    %v141 = vunpack.c.l.b16 %v80
    %v142 = vunpack.c.l.b16 %v81
    %v143 = vunpack.c.l.b16 %v82
    %v144 = vunpack.c.l.b16 %v83
    %v145 = vunpack.c.l.b16 %v84
    %v146 = vunpack.c.l.b16 %v85
    %v147 = vpack.c.b16 %v124, %v123
    %v148 = vpack.c.b16 %v126, %v125
    %v149 = vpack.c.b16 %v128, %v127
    %v150 = vpack.c.b16 %v130, %v129
    %v151 = vpack.c.b16 %v132, %v131
    %v152 = vpack.c.b16 %v134, %v133
    %v153 = vpack.c.b16 %v136, %v135
    %v154 = vpack.c.b16 %v138, %v137
    %v155 = vpack.c.b16 %v140, %v139
    %v156 = vpack.c.b16 %v142, %v141
    %v157 = vpack.c.b16 %v144, %v143
    %v158 = vpack.c.b16 %v146, %v145
    %vm171 = vcmask 523264
    %v173 = vsel %vm171, %v97, 0
    %175 = vmatprep.subr.bf16.mxu0 0
    %176 = vmatpush1.bf16.msra.mxu0 %v147
    %177 = vmatprep.subr.bf16.mxu0 0
    %178 = vmatpush1.bf16.msra.mxu0 %v148
    %179 = vmatprep.subr.bf16.mxu0 0
    %180 = vmatpush1.bf16.msra.mxu0 %v149
    %181 = vmatprep.subr.bf16.mxu0 0
    %182 = vmatpush1.bf16.msra.mxu0 %v150
    %183 = vmatprep.subr.bf16.mxu0 0
    %184 = vmatpush1.bf16.msra.mxu0 %v151
    %185 = vmatprep.subr.bf16.mxu0 0
    %186 = vmatpush1.bf16.msra.mxu0 %v152
    %187 = vmatprep.subr.bf16.mxu0 0
    %188 = vmatpush1.bf16.msra.mxu0 %v153
    %189 = vmatprep.subr.bf16.mxu0 0
    %190 = vmatpush1.bf16.msra.mxu0 %v154
    %191 = vmatprep.subr.bf16.mxu0 0
    %192 = vmatpush1.bf16.msra.mxu0 %v155
    %193 = vmatprep.subr.bf16.mxu0 0
    %194 = vmatpush1.bf16.msra.mxu0 %v156
    %195 = vmatprep.subr.bf16.mxu0 0
    %196 = vmatpush1.bf16.msra.mxu0 %v157
    %197 = vmatprep.subr.bf16.mxu0 0
    %198 = vmatpush1.bf16.msra.mxu0 %v158
    %199 = vmatprep.subr.bf16.mxu0 0
    %200 = vmatpush1.bf16.msra.mxu0 0
    %201 = vmatprep.subr.bf16.mxu0 0
    %202 = vmatpush1.bf16.msra.mxu0 0
    %203 = vmatprep.subr.bf16.mxu0 0
    %204 = vmatpush1.bf16.msra.mxu0 0
    %205 = vmatprep.subr.bf16.mxu0 0
    %206 = vmatpush1.bf16.msra.mxu0 0
    %207 = vmatprep.mubr.bf16.mxu0 %v173
    %208 = vmatmul.mubr.bf16.gmra.mrb[0].mxu0 %v96
    %v209 = vpop.f32.mrb[0].mxu0
    %v210 = vadd.f32 %v91, %v209
    %v211 = vpop.f32.mrb[0].mxu0
    %v212 = vpop.f32.mrb[0].mxu0
    %v213 = vpop.f32.mrb[0].mxu0
    %214 = vdwg.mxu0
    %v215 = vmax.f32 %v210, 0.0
    %v216 = vpack.c.bf16 %v215, %v215
    %v217 = vld [vmem:[#allocation7] sm:$0xf]
    %v218 = vld [vmem:[#allocation7 + $0x4] sm:$0xf]
    %v219 = vld [vmem:[#allocation7 + $0x8] sm:$0xf]
    %v220 = vld [vmem:[#allocation7 + $0xc] sm:$0xf]
    %v221 = vld [vmem:[#allocation7 + $0x10] sm:$0xf]
    %v222 = vld [vmem:[#allocation7 + $0x14] sm:$0xf]
    %v223 = vld [vmem:[#allocation7 + $0x18] sm:$0xf]
    %v224 = vld [vmem:[#allocation7 + $0x1c] sm:$0xf]
    %v225 = vld [vmem:[#allocation7 + $0x20] sm:$0xf]
    %v226 = vld [vmem:[#allocation7 + $0x24] sm:$0xf]
    %v227 = vld [vmem:[#allocation7 + $0x28] sm:$0xf]
    %v228 = vld [vmem:[#allocation7 + $0x2c] sm:$0xf]
    %v229 = vld [vmem:[#allocation7 + $0x30] sm:$0xf]
    %v230 = vld [vmem:[#allocation7 + $0x34] sm:$0xf]
    %v231 = vld [vmem:[#allocation7 + $0x38] sm:$0xf]
    %v232 = vld [vmem:[#allocation7 + $0x3c] sm:$0xf]
    %v233 = vld [vmem:[%s4] sm:$0x1]
    %v235 = vlaneseq
    %v236 = vshrl.u32 %v235, 7
    %v237 = vsub.s32 0, %v236
    %v238 = vrot.slane %v233, %v237
    %v256 = vunpack.c.l.b16 %v217
    %v257 = vunpack.c.l.b16 %v218
    %v258 = vunpack.c.l.b16 %v219
    %v259 = vunpack.c.l.b16 %v220
    %v260 = vunpack.c.l.b16 %v221
    %v261 = vunpack.c.l.b16 %v222
    %v262 = vunpack.c.l.b16 %v223
    %v263 = vunpack.c.l.b16 %v224
    %v264 = vunpack.c.l.b16 %v225
    %v265 = vunpack.c.l.b16 %v226
    %v266 = vunpack.c.l.b16 %v227
    %v267 = vunpack.c.l.b16 %v228
    %v268 = vunpack.c.l.b16 %v229
    %v269 = vunpack.c.l.b16 %v230
    %v270 = vunpack.c.l.b16 %v231
    %v271 = vunpack.c.l.b16 %v232
    %v272 = vpack.c.b16 %v257, %v256
    %v273 = vpack.c.b16 %v259, %v258
    %v274 = vpack.c.b16 %v261, %v260
    %v275 = vpack.c.b16 %v263, %v262
    %v276 = vpack.c.b16 %v265, %v264
    %v277 = vpack.c.b16 %v267, %v266
    %v278 = vpack.c.b16 %v269, %v268
    %v279 = vpack.c.b16 %v271, %v270
    %288 = vmatprep.subr.bf16.mxu0 0
    %289 = vmatpush1.bf16.msra.mxu0 %v272
    %290 = vmatprep.subr.bf16.mxu0 0
    %291 = vmatpush1.bf16.msra.mxu0 %v273
    %292 = vmatprep.subr.bf16.mxu0 0
    %293 = vmatpush1.bf16.msra.mxu0 %v274
    %294 = vmatprep.subr.bf16.mxu0 0
    %295 = vmatpush1.bf16.msra.mxu0 %v275
    %296 = vmatprep.subr.bf16.mxu0 0
    %297 = vmatpush1.bf16.msra.mxu0 %v276
    %298 = vmatprep.subr.bf16.mxu0 0
    %299 = vmatpush1.bf16.msra.mxu0 %v277
    %300 = vmatprep.subr.bf16.mxu0 0
    %301 = vmatpush1.bf16.msra.mxu0 %v278
    %302 = vmatprep.subr.bf16.mxu0 0
    %303 = vmatpush1.bf16.msra.mxu0 %v279
    %304 = vmatprep.subr.bf16.mxu0 0
    %305 = vmatpush1.bf16.msra.mxu0 0
    %306 = vmatprep.subr.bf16.mxu0 0
    %307 = vmatpush1.bf16.msra.mxu0 0
    %308 = vmatprep.subr.bf16.mxu0 0
    %309 = vmatpush1.bf16.msra.mxu0 0
    %310 = vmatprep.subr.bf16.mxu0 0
    %311 = vmatpush1.bf16.msra.mxu0 0
    %312 = vmatprep.subr.bf16.mxu0 0
    %313 = vmatpush1.bf16.msra.mxu0 0
    %314 = vmatprep.subr.bf16.mxu0 0
    %315 = vmatpush1.bf16.msra.mxu0 0
    %316 = vmatprep.subr.bf16.mxu0 0
    %317 = vmatpush1.bf16.msra.mxu0 0
    %318 = vmatprep.subr.bf16.mxu0 0
    %319 = vmatpush1.bf16.msra.mxu0 0
    %320 = vmatprep.mubr.bf16.mxu0 0
    %321 = vmatmul.mubr.bf16.gmra.mrb[0].mxu0 %v216
    %v322 = vpop.f32.mrb[0].mxu0
    %v323 = vadd.f32 %v238, %v322
    %v324 = vpop.f32.mrb[0].mxu0
    %v325 = vpop.f32.mrb[0].mxu0
    %v326 = vpop.f32.mrb[0].mxu0
    %327 = vdwg.mxu0
    %328 = vst [vmem:[#allocation8] sm:$0xff] %v323
    // Predicated region
    $region34: #{tpu_custom_call.1} parent=1 // pred_check
      _
    $region35: #{tpu_custom_call.1} parent=1 // pred_check_branch
      %330 = sbr.rel (0) target = $region37
    $region36: #{tpu_custom_call.1} parent=1 // pred_region
      %s332 = ssub.s32 128, 128
      %333 = vsyncadd [#allocation4], %s332
      %s335 = sshll.u32 [#allocation8], 4
      %s336 = int_to_ptr.vmem [resolvable:$true] %s335
      %338 = dma.vmem_to_hbm [thread:$0]  %s336, 128, %s5, [#allocation4]
    $region37: #{tpu_custom_call.1} parent=1 // pred_fallthru
      _
    // Predicated region
    $region38: #{tpu_custom_call.1} parent=1 // pred_check
      _
    $region39: #{tpu_custom_call.1} parent=1 // pred_check_branch
      %340 = sbr.rel (0) target = $region41
    $region40: #{tpu_custom_call.1} parent=1 // pred_region
      %341 = dma.done [#allocation4], 128
    $region41: #{tpu_custom_call.1} parent=1 // pred_fallthru
      _
    %342 = vsyncpa [#allocation3], 1
    %343 = vsyncpa [#allocation6], 1
    %344 = vsyncpa [#allocation4], 1

</llo_original>
